<compile_context>
chip_gen: v5e
topology: v5e:2x2
jax: 0.10.0
libtpu: 0.0.40
codegen_flags: <defaults>
</compile_context>

<pallas_src>
import jax
import jax.numpy as jnp
import numpy as np
from jax.experimental import pallas as pl
from jax.experimental.pallas import tpu as pltpu

LANE = 128


def _round_up(n, m):
    return ((n + m - 1) // m) * m


def policy_mlp_kernel(x_ref, w1_ref, w2_ref, w3_ref, b_ref, o_ref):
    # x_ref : (TB, S)     f32   un-padded features (S = state_dim <= 8)
    # w1_ref: (8, 128)    f32   rows 0..S-1 hold fc1 weight rows (fc1 runs on the VPU)
    # w2_ref: (128, 128)  bf16  zero-padded fc2 weights (VMEM-resident across the grid)
    # w3_ref: (128, 128)  bf16  zero-padded fc3 weights (VMEM-resident across the grid)
    # b_ref : (8, 128)    f32   rows 0/1/2 = b1/b2/b3, zero-padded columns
    # o_ref : (TB, OUT)   f32   narrow output (OUT = 1)
    x = x_ref[...]
    s_dim = x_ref.shape[1]
    out_dim = o_ref.shape[1]
    b1 = b_ref[0:1, :]
    b2 = b_ref[1:2, :]
    b3 = b_ref[2:3, :]

    # fc1 on the VPU: h1[m, n] = sum_s x[m, s] * w1[s, n] + b1[n]  (K = state_dim is tiny).
    acc = x[:, 0:1] * w1_ref[0:1, :]
    for s in range(1, s_dim):
        acc = acc + x[:, s:s + 1] * w1_ref[s:s + 1, :]
    h1 = jnp.maximum(acc + b1, 0.0)

    # fc2 + ReLU (bf16 MXU operands, f32 accumulation). Padded lanes stay exactly 0.
    h2 = jnp.dot(h1.astype(w2_ref.dtype), w2_ref[...],
                 preferred_element_type=jnp.float32) + b2
    h2 = jnp.maximum(h2, 0.0)

    # fc3 + Tanh -- slice to the real output columns BEFORE tanh and store narrow.
    h3 = jnp.dot(h2.astype(w3_ref.dtype), w3_ref[...],
                 preferred_element_type=jnp.float32) + b3
    o_ref[...] = jnp.tanh(h3[:, :out_dim]).astype(o_ref.dtype)


def init_params(key, state_dim=3, hidden_dim=32):
    """Canonical f32 params mimicking nn.Linear's default U(-1/sqrt(fan_in), 1/sqrt(fan_in)).
    Weights are stored (in_features, out_features), i.e. transposed vs PyTorch's (out, in)."""
    ks = jax.random.split(key, 6)

    def linear(kw, kb, fan_in, fan_out):
        bound = 1.0 / np.sqrt(fan_in)
        w = jax.random.uniform(kw, (fan_in, fan_out), jnp.float32, -bound, bound)
        b = jax.random.uniform(kb, (1, fan_out), jnp.float32, -bound, bound)
        return w, b

    w1, b1 = linear(ks[0], ks[1], state_dim, hidden_dim)
    w2, b2 = linear(ks[2], ks[3], hidden_dim, hidden_dim)
    w3, b3 = linear(ks[4], ks[5], hidden_dim, 1)
    return {"w1": w1, "b1": b1, "w2": w2, "b2": b2, "w3": w3, "b3": b3}


def pad_params(params):
    """One-time prep: pack fc1 weights + all biases into small (8,128) f32 tiles and zero-pad
    fc2/fc3 weights to (128,128) bf16."""
    s_dim, h1d = params["w1"].shape
    h2i, h2o = params["w2"].shape
    h3i, out_dim = params["w3"].shape
    # The packed-tile scheme assumes small dims; fail loudly otherwise (perf-review concern).
    if s_dim > 8:
        raise ValueError(f"state_dim={s_dim} > 8: fc1 VPU packing needs state_dim <= 8")
    if max(h1d, h2i, h2o, h3i, out_dim) > LANE:
        raise ValueError("hidden/out dims must be <= 128 for the single-tile padding scheme")

    def padw(w):
        p = jnp.zeros((LANE, LANE), jnp.float32)
        p = p.at[: w.shape[0], : w.shape[1]].set(w)
        return p.astype(jnp.bfloat16)

    w1_tile = jnp.zeros((8, LANE), jnp.float32)
    w1_tile = w1_tile.at[:s_dim, :h1d].set(params["w1"])

    b_all = jnp.zeros((8, LANE), jnp.float32)
    b_all = b_all.at[0, : params["b1"].shape[1]].set(params["b1"][0])
    b_all = b_all.at[1, : params["b2"].shape[1]].set(params["b2"][0])
    b_all = b_all.at[2, : params["b3"].shape[1]].set(params["b3"][0])

    return {
        "w1t": w1_tile,
        "w2p": padw(params["w2"]),
        "w3p": padw(params["w3"]),
        "b_all": b_all,
        "state_dim": s_dim,
        "out_dim": out_dim,
    }


def policy_network_forward(x, padded, *, tb=None):
    """x: (B, state_dim) f32.  padded: output of pad_params.  Returns (B, out_dim) f32."""
    x = x.astype(jnp.float32)
    B, s = x.shape
    assert s == padded["state_dim"]
    out_dim = padded["out_dim"]

    if tb is None:
        b8 = _round_up(max(B, 8), 8)
        # Big tiles amortize the ~0.35 us/grid-step overhead; at tb=4096 the per-step VMEM
        # footprint (x 48 KiB + out 16 KiB double-buffered, ~65 KiB resident weights, a few MiB
        # of f32 intermediates) is far under the 32 MiB limit requested below.
        tb = min(4096, b8)
        # v7x megacore: once the batch is big enough, keep >= 2 grid steps so the "parallel"
        # axis can split across both TensorCores.
        if b8 >= 2048 and b8 <= tb:
            tb = _round_up((b8 + 1) // 2, 8)
    tb = _round_up(max(tb, 8), 8)
    b_pad = _round_up(max(B, tb), tb)

    # Only the batch dim is (possibly) padded; the feature dim stays at state_dim.
    x_p = x if b_pad == B else jnp.zeros((b_pad, s), jnp.float32).at[:B].set(x)

    out = pl.pallas_call(
        policy_mlp_kernel,
        out_shape=jax.ShapeDtypeStruct((b_pad, out_dim), jnp.float32),
        grid=(b_pad // tb,),
        in_specs=[
            pl.BlockSpec((tb, s), lambda i: (i, 0)),       # x: batch-tiled, un-padded features
            pl.BlockSpec((8, LANE), lambda i: (0, 0)),     # packed fc1 weights (VPU path)
            pl.BlockSpec((LANE, LANE), lambda i: (0, 0)),  # w2: VMEM-resident across grid
            pl.BlockSpec((LANE, LANE), lambda i: (0, 0)),  # w3
            pl.BlockSpec((8, LANE), lambda i: (0, 0)),     # packed biases
        ],
        out_specs=pl.BlockSpec((tb, out_dim), lambda i: (i, 0)),  # narrow output tile
        compiler_params=pltpu.CompilerParams(
            dimension_semantics=("parallel",),   # shard batch tiles across v7x's 2 TCs
            vmem_limit_bytes=32 * 1024 * 1024,   # headroom over v5e's 16 MiB scoped default
        ),
    )(x_p, padded["w1t"], padded["w2p"], padded["w3p"], padded["b_all"])

    return out if b_pad == B else out[:B]


def reference_forward_f32(x, p):
    h = jnp.maximum(x @ p["w1"] + p["b1"], 0.0)
    h = jnp.maximum(h @ p["w2"] + p["b2"], 0.0)
    return jnp.tanh(h @ p["w3"] + p["b3"])


def reference_forward_kernel_numerics(x, p):
    """Emulates the kernel's numerics: fc1 as an f32 VPU sum (same op order), fc2/fc3 with
    bf16 matmul operands and f32 accumulation/activations."""
    w1 = p["w1"]
    acc = x[:, 0:1] * w1[0:1, :]
    for s in range(1, w1.shape[0]):
        acc = acc + x[:, s:s + 1] * w1[s:s + 1, :]
    h = jnp.maximum(acc + p["b1"], 0.0)
    bf = lambda a: a.astype(jnp.bfloat16)
    h = jnp.maximum(jnp.dot(bf(h), bf(p["w2"]), preferred_element_type=jnp.float32) + p["b2"], 0.0)
    o = jnp.dot(bf(h), bf(p["w3"]), preferred_element_type=jnp.float32) + p["b3"]
    return jnp.tanh(o)


if __name__ == "__main__":
    key = jax.random.PRNGKey(0)
    k_x, k_p = jax.random.split(key)

    B, state_dim, hidden_dim = 8, 3, 32
    x = jax.random.normal(k_x, (B, state_dim), jnp.float32)
    params = init_params(k_p, state_dim=state_dim, hidden_dim=hidden_dim)
    padded = pad_params(params)

    out = jax.block_until_ready(policy_network_forward(x, padded))
    assert out.shape == (B, 1)

    # Tight check vs a reference with the same numerics (f32 fc1, bf16-operand fc2/fc3).
    ref_k = reference_forward_kernel_numerics(x, params)
    np.testing.assert_allclose(np.asarray(out), np.asarray(ref_k), rtol=1e-4, atol=1e-4)
    # Sanity check vs the pure-f32 PyTorch-equivalent forward (bf16 rounding tolerance).
    ref_f32 = reference_forward_f32(x, params)
    np.testing.assert_allclose(np.asarray(out), np.asarray(ref_f32), rtol=0, atol=5e-2)

    print("KERNEL_OK")
</pallas_src>

<mosaic_0001>
module attributes {stable_mosaic.version = 11 : i64} {
  func.func @policy_mlp_kernel(%arg0: i32, %arg1: memref<8x3xf32, #tpu.memory_space<vmem>>, %arg2: memref<8x128xf32, #tpu.memory_space<vmem>>, %arg3: memref<128x128xbf16, #tpu.memory_space<vmem>>, %arg4: memref<128x128xbf16, #tpu.memory_space<vmem>>, %arg5: memref<8x128xf32, #tpu.memory_space<vmem>>, %arg6: memref<8x1xf32, #tpu.memory_space<vmem>>) attributes {dimension_semantics = [#tpu.dimension_semantics<parallel>], iteration_bounds = array<i64: 1>, scalar_prefetch = 0 : i64, scratch_operands = 0 : i64, tpu.core_type = #tpu.core_type<tc>, window_params = [{transform_indices = @transform_0, window_bounds = array<i64: 8, 3>}, {pipeline_mode = #tpu.pipeline_mode<synchronous>, transform_indices = @transform_1, window_bounds = array<i64: 8, 128>}, {pipeline_mode = #tpu.pipeline_mode<synchronous>, transform_indices = @transform_2, window_bounds = array<i64: 128, 128>}, {pipeline_mode = #tpu.pipeline_mode<synchronous>, transform_indices = @transform_3, window_bounds = array<i64: 128, 128>}, {pipeline_mode = #tpu.pipeline_mode<synchronous>, transform_indices = @transform_4, window_bounds = array<i64: 8, 128>}, {transform_indices = @transform_5, window_bounds = array<i64: 8, 1>}]} {
    %c0 = arith.constant 0 : index
    %c0_0 = arith.constant 0 : index
    %0 = vector.load %arg1[%c0, %c0_0] : memref<8x3xf32, #tpu.memory_space<vmem>>, vector<8x3xf32>
    %c0_1 = arith.constant 0 : index
    %c0_2 = arith.constant 0 : index
    %1 = vector.load %arg5[%c0_1, %c0_2] : memref<8x128xf32, #tpu.memory_space<vmem>>, vector<1x128xf32>
    %c1 = arith.constant 1 : index
    %c0_3 = arith.constant 0 : index
    %2 = vector.load %arg5[%c1, %c0_3] : memref<8x128xf32, #tpu.memory_space<vmem>>, vector<1x128xf32>
    %c2 = arith.constant 2 : index
    %c0_4 = arith.constant 0 : index
    %3 = vector.load %arg5[%c2, %c0_4] : memref<8x128xf32, #tpu.memory_space<vmem>>, vector<1x128xf32>
    %4 = vector.extract_strided_slice %0 {offsets = [0, 0], sizes = [8, 1], strides = [1, 1]} : vector<8x3xf32> to vector<8x1xf32>
    %c0_5 = arith.constant 0 : index
    %c0_6 = arith.constant 0 : index
    %5 = vector.load %arg2[%c0_5, %c0_6] : memref<8x128xf32, #tpu.memory_space<vmem>>, vector<1x128xf32>
    %6 = vector.broadcast %4 : vector<8x1xf32> to vector<8x128xf32>
    %7 = vector.broadcast %5 : vector<1x128xf32> to vector<8x128xf32>
    %8 = arith.mulf %6, %7 : vector<8x128xf32>
    %9 = vector.extract_strided_slice %0 {offsets = [0, 1], sizes = [8, 1], strides = [1, 1]} : vector<8x3xf32> to vector<8x1xf32>
    %c1_7 = arith.constant 1 : index
    %c0_8 = arith.constant 0 : index
    %10 = vector.load %arg2[%c1_7, %c0_8] : memref<8x128xf32, #tpu.memory_space<vmem>>, vector<1x128xf32>
    %11 = vector.broadcast %9 : vector<8x1xf32> to vector<8x128xf32>
    %12 = vector.broadcast %10 : vector<1x128xf32> to vector<8x128xf32>
    %13 = arith.mulf %11, %12 : vector<8x128xf32>
    %14 = arith.addf %8, %13 : vector<8x128xf32>
    %15 = vector.extract_strided_slice %0 {offsets = [0, 2], sizes = [8, 1], strides = [1, 1]} : vector<8x3xf32> to vector<8x1xf32>
    %c2_9 = arith.constant 2 : index
    %c0_10 = arith.constant 0 : index
    %16 = vector.load %arg2[%c2_9, %c0_10] : memref<8x128xf32, #tpu.memory_space<vmem>>, vector<1x128xf32>
    %17 = vector.broadcast %15 : vector<8x1xf32> to vector<8x128xf32>
    %18 = vector.broadcast %16 : vector<1x128xf32> to vector<8x128xf32>
    %19 = arith.mulf %17, %18 : vector<8x128xf32>
    %20 = arith.addf %14, %19 : vector<8x128xf32>
    %21 = vector.broadcast %1 : vector<1x128xf32> to vector<8x128xf32>
    %22 = arith.addf %20, %21 : vector<8x128xf32>
    %cst = arith.constant 0.000000e+00 : f32
    %23 = vector.broadcast %cst : f32 to vector<8x128xf32>
    %24 = arith.maximumf %22, %23 : vector<8x128xf32>
    %25 = arith.truncf %24 : vector<8x128xf32> to vector<8x128xbf16>
    %c0_11 = arith.constant 0 : index
    %c0_12 = arith.constant 0 : index
    %26 = vector.load %arg3[%c0_11, %c0_12] : memref<128x128xbf16, #tpu.memory_space<vmem>>, vector<128x128xbf16>
    %cst_13 = arith.constant dense<0.000000e+00> : vector<8x128xf32>
    %27 = tpu.matmul %25, %26, %cst_13 {dimension_numbers = #tpu.dot_dimension_numbers<[1], [0], [0], [1], [0, 0, 1, 1], [], []>} : vector<8x128xbf16>, vector<128x128xbf16>, vector<8x128xf32> -> vector<8x128xf32>
    %28 = vector.broadcast %2 : vector<1x128xf32> to vector<8x128xf32>
    %29 = arith.addf %27, %28 : vector<8x128xf32>
    %cst_14 = arith.constant 0.000000e+00 : f32
    %30 = vector.broadcast %cst_14 : f32 to vector<8x128xf32>
    %31 = arith.maximumf %29, %30 : vector<8x128xf32>
    %32 = arith.truncf %31 : vector<8x128xf32> to vector<8x128xbf16>
    %c0_15 = arith.constant 0 : index
    %c0_16 = arith.constant 0 : index
    %33 = vector.load %arg4[%c0_15, %c0_16] : memref<128x128xbf16, #tpu.memory_space<vmem>>, vector<128x128xbf16>
    %cst_17 = arith.constant dense<0.000000e+00> : vector<8x128xf32>
    %34 = tpu.matmul %32, %33, %cst_17 {dimension_numbers = #tpu.dot_dimension_numbers<[1], [0], [0], [1], [0, 0, 1, 1], [], []>} : vector<8x128xbf16>, vector<128x128xbf16>, vector<8x128xf32> -> vector<8x128xf32>
    %35 = vector.broadcast %3 : vector<1x128xf32> to vector<8x128xf32>
    %36 = arith.addf %34, %35 : vector<8x128xf32>
    %37 = vector.extract_strided_slice %36 {offsets = [0, 0], sizes = [8, 1], strides = [1, 1]} : vector<8x128xf32> to vector<8x1xf32>
    %38 = math.tanh %37 : vector<8x1xf32>
    %c0_18 = arith.constant 0 : index
    %c0_19 = arith.constant 0 : index
    %39 = vector.load %arg6[%c0_18, %c0_19] : memref<8x1xf32, #tpu.memory_space<vmem>>, vector<8x1xf32>
    tpu.vector_store %arg6[%c0_18, %c0_19], %38 {strides = array<i32>} : memref<8x1xf32, #tpu.memory_space<vmem>>, vector<8x1xf32>,
    return
  }
  func.func @transform_0(%arg0: i32) -> (i32, i32) {
    %c0_i32 = arith.constant 0 : i32
    %c0_i32_0 = arith.constant 0 : i32
    return %arg0, %c0_i32 : i32, i32
  }
  func.func @transform_1(%arg0: i32) -> (i32, i32) {
    %c0_i32 = arith.constant 0 : i32
    %c0_i32_0 = arith.constant 0 : i32
    %c0_i32_1 = arith.constant 0 : i32
    return %c0_i32, %c0_i32_0 : i32, i32
  }
  func.func @transform_2(%arg0: i32) -> (i32, i32) {
    %c0_i32 = arith.constant 0 : i32
    %c0_i32_0 = arith.constant 0 : i32
    %c0_i32_1 = arith.constant 0 : i32
    return %c0_i32, %c0_i32_0 : i32, i32
  }
  func.func @transform_3(%arg0: i32) -> (i32, i32) {
    %c0_i32 = arith.constant 0 : i32
    %c0_i32_0 = arith.constant 0 : i32
    %c0_i32_1 = arith.constant 0 : i32
    return %c0_i32, %c0_i32_0 : i32, i32
  }
  func.func @transform_4(%arg0: i32) -> (i32, i32) {
    %c0_i32 = arith.constant 0 : i32
    %c0_i32_0 = arith.constant 0 : i32
    %c0_i32_1 = arith.constant 0 : i32
    return %c0_i32, %c0_i32_0 : i32, i32
  }
  func.func @transform_5(%arg0: i32) -> (i32, i32) {
    %c0_i32 = arith.constant 0 : i32
    %c0_i32_0 = arith.constant 0 : i32
    return %arg0, %c0_i32 : i32, i32
  }
}

</mosaic_0001>

<llo_original>
// kernel: tpu_custom_call.1
$region0: #{tpu_custom_call.1}
  #allocation0 [shape = 'u32[]', space=smem, size = 0x4, offset = 0x4, fixed_abs, tag = 'smem constant byte address 0x4 - core index']
  #allocation1 [shape = 'u32[72,128]{1,0:T(1,128)}', space=vmem, size = 0x9000, scoped, tag = 'internal scratch']
  %s0 = inlined_call_operand.vmem [shape: f32[8,3], index: 0, kind: input, shape index: {}]
  %s1 = inlined_call_operand.vmem [shape: f32[8,128], index: 1, kind: input, shape index: {}]
  %s2 = inlined_call_operand.hbm [shape: bf16[128,128], index: 2, kind: input, shape index: {}]
  %s3 = inlined_call_operand.hbm [shape: bf16[128,128], index: 3, kind: input, shape index: {}]
  %s4 = inlined_call_operand.hbm [shape: f32[8,128], index: 4, kind: input, shape index: {}]
  %s5 = inlined_call_operand.vmem [shape: f32[8,1], index: 5, kind: output, shape index: {}]
  %s6 = sld [smem:[#allocation0]]
  $region42: #{tpu_custom_call.1} parent=0
    _
  %s8 = ssub.s32 1, %s6
  %s9 = scalar_select 0, %s8, %s6
  $region1: #{tpu_custom_call.1} parent=0
    #allocation2 [shape = 'u8[32768]{0}', space=vmem, size = 0x8000, scoped, tag = 'input window, operand 2, single buffered']
    #allocation3 [shape = 's32[1]{0}', space=sflag, size = 0x4, scoped, tag = 'scoped memory for tpu_custom_call.1']
    #allocation4 [shape = 'u8[32768]{0}', space=vmem, size = 0x8000, scoped, tag = 'input window, operand 3, single buffered']
    #allocation5 [shape = 's32[1]{0}', space=sflag, size = 0x4, scoped, tag = 'scoped memory for tpu_custom_call.1']
    #allocation6 [shape = 'u8[4096]{0}', space=vmem, size = 0x1000, scoped, tag = 'input window, operand 4, single buffered']
    %10 = vsyncpa [#allocation3], 0
    %11 = vsyncpa [#allocation5], 0
    // Predicated region
    $region2: #{tpu_custom_call.1} parent=1 // pred_check
      _
    $region3: #{tpu_custom_call.1} parent=1 // pred_check_branch
      %13 = sbr.rel (0) target = $region5
    $region4: #{tpu_custom_call.1} parent=1 // pred_region
      _
    $region5: #{tpu_custom_call.1} parent=1 // pred_fallthru
      _
    // Predicated region
    $region6: #{tpu_custom_call.1} parent=1 // pred_check
      _
    $region7: #{tpu_custom_call.1} parent=1 // pred_check_branch
      %15 = sbr.rel (0) target = $region9
    $region8: #{tpu_custom_call.1} parent=1 // pred_region
      _
    $region9: #{tpu_custom_call.1} parent=1 // pred_fallthru
      _
    // Predicated region
    $region10: #{tpu_custom_call.1} parent=1 // pred_check
      _
    $region11: #{tpu_custom_call.1} parent=1 // pred_check_branch
      %17 = sbr.rel (0) target = $region13
    $region12: #{tpu_custom_call.1} parent=1 // pred_region
      %19 = vsyncadd [#allocation3], 0
      %s20 = sshll.u32 %s2, 4
      %s21 = int_to_ptr.hbm [resolvable:$true] %s20
      %s22 = sshll.u32 [#allocation2], 4
      %s23 = int_to_ptr.vmem [resolvable:$true] %s22
      %28 = dma.hbm_to_vmem [thread:$0]  %s21, 1024, %s23, [#allocation3], 64, 64, 4
    $region13: #{tpu_custom_call.1} parent=1 // pred_fallthru
      _
    // Predicated region
    $region14: #{tpu_custom_call.1} parent=1 // pred_check
      _
    $region15: #{tpu_custom_call.1} parent=1 // pred_check_branch
      %30 = sbr.rel (0) target = $region17
    $region16: #{tpu_custom_call.1} parent=1 // pred_region
      %32 = vsyncadd [#allocation5], 0
      %s33 = sshll.u32 %s3, 4
      %s34 = int_to_ptr.hbm [resolvable:$true] %s33
      %s35 = sshll.u32 [#allocation4], 4
      %s36 = int_to_ptr.vmem [resolvable:$true] %s35
      %41 = dma.hbm_to_vmem [thread:$0]  %s34, 1024, %s36, [#allocation5], 64, 64, 4
    $region17: #{tpu_custom_call.1} parent=1 // pred_fallthru
      _
    // Predicated region
    $region18: #{tpu_custom_call.1} parent=1 // pred_check
      _
    $region19: #{tpu_custom_call.1} parent=1 // pred_check_branch
      %43 = sbr.rel (0) target = $region21
    $region20: #{tpu_custom_call.1} parent=1 // pred_region
      %45 = vsyncadd [#allocation5], 0
      %s47 = sshll.u32 %s4, 4
      %s48 = int_to_ptr.hbm [resolvable:$true] %s47
      %s49 = sshll.u32 [#allocation6], 4
      %s50 = int_to_ptr.vmem [resolvable:$true] %s49
      %52 = dma.hbm_to_vmem [thread:$0]  %s48, 128, %s50, [#allocation5]
    $region21: #{tpu_custom_call.1} parent=1 // pred_fallthru
      _
    // Predicated region
    $region22: #{tpu_custom_call.1} parent=1 // pred_check
      _
    $region23: #{tpu_custom_call.1} parent=1 // pred_check_branch
      %54 = sbr.rel (0) target = $region25
    $region24: #{tpu_custom_call.1} parent=1 // pred_region
      %56 = dma.done [#allocation3], 1024
    $region25: #{tpu_custom_call.1} parent=1 // pred_fallthru
      _
    // Predicated region
    $region26: #{tpu_custom_call.1} parent=1 // pred_check
      _
    $region27: #{tpu_custom_call.1} parent=1 // pred_check_branch
      %58 = sbr.rel (0) target = $region29
    $region28: #{tpu_custom_call.1} parent=1 // pred_region
      %60 = dma.done [#allocation5], 1024
    $region29: #{tpu_custom_call.1} parent=1 // pred_fallthru
      _
    // Predicated region
    $region30: #{tpu_custom_call.1} parent=1 // pred_check
      _
    $region31: #{tpu_custom_call.1} parent=1 // pred_check_branch
      %62 = sbr.rel (0) target = $region33
    $region32: #{tpu_custom_call.1} parent=1 // pred_region
      %64 = dma.done [#allocation5], 128
    $region33: #{tpu_custom_call.1} parent=1 // pred_fallthru
      _
    %v65 = vld [vmem:[%s0] sm:$0xff]
    %v66 = vld [vmem:[#allocation6] sm:$0x1]
    %v67 = vld [vmem:[#allocation6 + $0x1] sm:$0x1]
    %v68 = vld [vmem:[#allocation6 + $0x2] sm:$0x1]
    %v69 = vld [vmem:[%s1] sm:$0x1]
    %71 = vset.pattern.permute.xlu0 0
    %72 = vperm.xlu0 %71, %v65
    %v73 = vpop.permute.xlu0 %72
    %v75 = vperm.slane %v69, 0
    %v76 = vmul.f32 %v73, %v75
    %v77 = vld [vmem:[%s1 + $0x1] sm:$0x1]
    %78 = vset.pattern.permute.xlu0 1
    %79 = vperm.xlu0 %78, %v65
    %v80 = vpop.permute.xlu0 %79
    %v82 = vperm.slane %v77, 0
    %v83 = vmul.f32 %v80, %v82
    %v84 = vadd.f32 %v76, %v83
    %v85 = vld [vmem:[%s1 + $0x2] sm:$0x1]
    %86 = vset.pattern.permute.xlu0 2
    %87 = vperm.xlu0 %86, %v65
    %v88 = vpop.permute.xlu0 %87
    %v90 = vperm.slane %v85, 0
    %v91 = vmul.f32 %v88, %v90
    %v92 = vadd.f32 %v84, %v91
    %v93 = vperm.slane %v66, 0
    %v94 = vadd.f32 %v92, %v93
    %v95 = vmax.f32 %v94, 0.0
    %v96 = vpack.c.bf16 %v95, %v95
    %v97 = vld [vmem:[#allocation2] sm:$0xf]
    %v98 = vld [vmem:[#allocation2 + $0x4] sm:$0xf]
    %v99 = vld [vmem:[#allocation2 + $0x8] sm:$0xf]
    %v100 = vld [vmem:[#allocation2 + $0xc] sm:$0xf]
    %v101 = vld [vmem:[#allocation2 + $0x10] sm:$0xf]
    %v102 = vld [vmem:[#allocation2 + $0x14] sm:$0xf]
    %v103 = vld [vmem:[#allocation2 + $0x18] sm:$0xf]
    %v104 = vld [vmem:[#allocation2 + $0x1c] sm:$0xf]
    %v105 = vld [vmem:[#allocation2 + $0x20] sm:$0xf]
    %v106 = vld [vmem:[#allocation2 + $0x24] sm:$0xf]
    %v107 = vld [vmem:[#allocation2 + $0x28] sm:$0xf]
    %v108 = vld [vmem:[#allocation2 + $0x2c] sm:$0xf]
    %v109 = vld [vmem:[#allocation2 + $0x30] sm:$0xf]
    %v110 = vld [vmem:[#allocation2 + $0x34] sm:$0xf]
    %v111 = vld [vmem:[#allocation2 + $0x38] sm:$0xf]
    %v112 = vld [vmem:[#allocation2 + $0x3c] sm:$0xf]
    %v113 = vperm.slane %v67, 0
    %v130 = vunpack.c.l.b16 %v97
    %v131 = vunpack.c.l.b16 %v98
    %v132 = vunpack.c.l.b16 %v99
    %v133 = vunpack.c.l.b16 %v100
    %v134 = vunpack.c.l.b16 %v101
    %v135 = vunpack.c.l.b16 %v102
    %v136 = vunpack.c.l.b16 %v103
    %v137 = vunpack.c.l.b16 %v104
    %v138 = vunpack.c.l.b16 %v105
    %v139 = vunpack.c.l.b16 %v106
    %v140 = vunpack.c.l.b16 %v107
    %v141 = vunpack.c.l.b16 %v108
    %v142 = vunpack.c.l.b16 %v109
    %v143 = vunpack.c.l.b16 %v110
    %v144 = vunpack.c.l.b16 %v111
    %v145 = vunpack.c.l.b16 %v112
    %v146 = vpack.c.b16 %v131, %v130
    %v147 = vpack.c.b16 %v133, %v132
    %v148 = vpack.c.b16 %v135, %v134
    %v149 = vpack.c.b16 %v137, %v136
    %v150 = vpack.c.b16 %v139, %v138
    %v151 = vpack.c.b16 %v141, %v140
    %v152 = vpack.c.b16 %v143, %v142
    %v153 = vpack.c.b16 %v145, %v144
    %162 = vmatpush.bf16.msra.mxu0 %v153
    %163 = vmatpush.bf16.msra.mxu0 %v152
    %164 = vmatpush.bf16.msra.mxu0 %v151
    %165 = vmatpush.bf16.msra.mxu0 %v150
    %166 = vmatpush.bf16.msra.mxu0 %v149
    %167 = vmatpush.bf16.msra.mxu0 %v148
    %168 = vmatpush.bf16.msra.mxu0 %v147
    %169 = vmatpush.bf16.msra.mxu0 %v146
    %170 = vmatmul.bf16.gmra.mxu0 %v96
    %v171 = vpop.f32.mrf.mxu0
    %v172 = vadd.f32 %v113, %v171
    %v173 = vpop.f32.mrf.mxu0
    %174 = vdwg.mxu0
    %v175 = vmax.f32 %v172, 0.0
    %v176 = vpack.c.bf16 %v175, %v175
    %v177 = vld [vmem:[#allocation4] sm:$0xf]
    %v178 = vld [vmem:[#allocation4 + $0x4] sm:$0xf]
    %v179 = vld [vmem:[#allocation4 + $0x8] sm:$0xf]
    %v180 = vld [vmem:[#allocation4 + $0xc] sm:$0xf]
    %v181 = vld [vmem:[#allocation4 + $0x10] sm:$0xf]
    %v182 = vld [vmem:[#allocation4 + $0x14] sm:$0xf]
    %v183 = vld [vmem:[#allocation4 + $0x18] sm:$0xf]
    %v184 = vld [vmem:[#allocation4 + $0x1c] sm:$0xf]
    %v185 = vld [vmem:[#allocation4 + $0x20] sm:$0xf]
    %v186 = vld [vmem:[#allocation4 + $0x24] sm:$0xf]
    %v187 = vld [vmem:[#allocation4 + $0x28] sm:$0xf]
    %v188 = vld [vmem:[#allocation4 + $0x2c] sm:$0xf]
    %v189 = vld [vmem:[#allocation4 + $0x30] sm:$0xf]
    %v190 = vld [vmem:[#allocation4 + $0x34] sm:$0xf]
    %v191 = vld [vmem:[#allocation4 + $0x38] sm:$0xf]
    %v192 = vld [vmem:[#allocation4 + $0x3c] sm:$0xf]
    %v193 = vperm.slane %v68, 0
    %v210 = vunpack.c.l.b16 %v177
    %v211 = vunpack.c.l.b16 %v178
    %v212 = vunpack.c.l.b16 %v179
    %v213 = vunpack.c.l.b16 %v180
    %v214 = vunpack.c.l.b16 %v181
    %v215 = vunpack.c.l.b16 %v182
    %v216 = vunpack.c.l.b16 %v183
    %v217 = vunpack.c.l.b16 %v184
    %v218 = vunpack.c.l.b16 %v185
    %v219 = vunpack.c.l.b16 %v186
    %v220 = vunpack.c.l.b16 %v187
    %v221 = vunpack.c.l.b16 %v188
    %v222 = vunpack.c.l.b16 %v189
    %v223 = vunpack.c.l.b16 %v190
    %v224 = vunpack.c.l.b16 %v191
    %v225 = vunpack.c.l.b16 %v192
    %v226 = vpack.c.b16 %v211, %v210
    %v227 = vpack.c.b16 %v213, %v212
    %v228 = vpack.c.b16 %v215, %v214
    %v229 = vpack.c.b16 %v217, %v216
    %v230 = vpack.c.b16 %v219, %v218
    %v231 = vpack.c.b16 %v221, %v220
    %v232 = vpack.c.b16 %v223, %v222
    %v233 = vpack.c.b16 %v225, %v224
    %242 = vmatpush.bf16.msra.mxu0 %v233
    %243 = vmatpush.bf16.msra.mxu0 %v232
    %244 = vmatpush.bf16.msra.mxu0 %v231
    %245 = vmatpush.bf16.msra.mxu0 %v230
    %246 = vmatpush.bf16.msra.mxu0 %v229
    %247 = vmatpush.bf16.msra.mxu0 %v228
    %248 = vmatpush.bf16.msra.mxu0 %v227
    %249 = vmatpush.bf16.msra.mxu0 %v226
    %250 = vmatmul.bf16.gmra.mxu0 %v176
    %v251 = vpop.f32.mrf.mxu0
    %v252 = vadd.f32 %v193, %v251
    %v253 = vpop.f32.mrf.mxu0
    %254 = vdwg.mxu0
    %v255 = vtanh.pop %v252
    %vm256 = vcmask 7168
    %257 = vst.msk [vmem:[%s5] sm:$0xff] %vm256, %v255
    // Predicated region
    $region34: #{tpu_custom_call.1} parent=1 // pred_check
      _
    $region35: #{tpu_custom_call.1} parent=1 // pred_check_branch
      %259 = sbr.rel (0) target = $region37
    $region36: #{tpu_custom_call.1} parent=1 // pred_region
      _
    $region37: #{tpu_custom_call.1} parent=1 // pred_fallthru
      _
    // Predicated region
    $region38: #{tpu_custom_call.1} parent=1 // pred_check
      _
    $region39: #{tpu_custom_call.1} parent=1 // pred_check_branch
      %261 = sbr.rel (0) target = $region41
    $region40: #{tpu_custom_call.1} parent=1 // pred_region
      _
    $region41: #{tpu_custom_call.1} parent=1 // pred_fallthru
      _
    %262 = vsyncpa [#allocation3], 1
    %263 = vsyncpa [#allocation5], 1

</llo_original>
